<compile_context>
chip_gen: v5e
topology: v5e:2x2
jax: 0.10.0
libtpu: 0.0.40
codegen_flags: <defaults>
</compile_context>

<pallas_src>
import jax
import jax.numpy as jnp
from jax.experimental import pallas as pl
from jax.experimental.pallas import tpu as pltpu


def _round_up(n, m):
    return ((n + m - 1) // m) * m


def dqn_mlp_kernel(x_ref, w1_ref, b1_ref, w2_ref, b2_ref, w3_ref, b3_ref, o_ref):
    """Whole DQN forward for one batch tile: fc1 -> relu -> fc2 -> relu -> fc3."""
    # x arrives as f32; cast to the matmul dtype in-kernel (no wrapper cast pass).
    x = x_ref[...].astype(w1_ref.dtype)
    h1 = jnp.dot(x, w1_ref[...], preferred_element_type=jnp.float32) + b1_ref[...]
    h1 = jnp.maximum(h1, 0.0)                                    # f32 activations
    h2 = jnp.dot(h1.astype(w2_ref.dtype), w2_ref[...],
                 preferred_element_type=jnp.float32) + b2_ref[...]
    h2 = jnp.maximum(h2, 0.0)
    out = jnp.dot(h2.astype(w3_ref.dtype), w3_ref[...],
                  preferred_element_type=jnp.float32) + b3_ref[...]
    o_ref[...] = out.astype(o_ref.dtype)


def prepare_params(params, compute_dtype=jnp.bfloat16):
    """One-time (hoisted) weight preparation: bf16 matmul weights, f32 biases.

    Call this once outside the RL hot loop; dqn_forward then launches a single
    Pallas kernel with no per-call casts or pads.
    """
    w1, b1, w2, b2, w3, b3 = params
    return (w1.astype(compute_dtype), b1.astype(jnp.float32),
            w2.astype(compute_dtype), b2.astype(jnp.float32),
            w3.astype(compute_dtype), b3.astype(jnp.float32))


def dqn_forward(x, prepared_params, *, tile_b=2048):
    """Runs the DQN MLP; batch tiled over a 'parallel' Pallas grid."""
    w1, b1, w2, b2, w3, b3 = prepared_params
    B, S = x.shape
    H = w1.shape[1]
    A = w3.shape[1]

    # Batch tile: big enough to amortize per-grid-step overhead, clamped to B.
    # If tb == B (single step) it equals the full array dim -> always legal;
    # otherwise it is a multiple of 8 (f32 sublane alignment).
    tb = min(_round_up(tile_b, 8), B)
    # v7x megacore: with a single grid step one of the two TensorCores idles.
    # For medium/large batches split the batch into (at least) two steps.
    if B >= 1024 and pl.cdiv(B, tb) < 2:
        tb = _round_up(pl.cdiv(B, 2), 8)
    grid = (pl.cdiv(B, tb),)

    flops = 2 * B * (S * H + H * H + H * A)
    bytes_accessed = (
        x.size * x.dtype.itemsize
        + sum(a.size * a.dtype.itemsize for a in (w1, b1, w2, b2, w3, b3))
        + B * A * 4
    )

    out = pl.pallas_call(
        dqn_mlp_kernel,
        out_shape=jax.ShapeDtypeStruct((B, A), jnp.float32),
        grid_spec=pltpu.PrefetchScalarGridSpec(
            num_scalar_prefetch=0,
            grid=grid,
            in_specs=[
                pl.BlockSpec((tb, S), lambda i: (i, 0)),   # x batch tile (f32)
                pl.BlockSpec((S, H), lambda i: (0, 0)),    # W1 (resident, bf16)
                pl.BlockSpec((1, H), lambda i: (0, 0)),    # b1 (f32)
                pl.BlockSpec((H, H), lambda i: (0, 0)),    # W2
                pl.BlockSpec((1, H), lambda i: (0, 0)),    # b2
                pl.BlockSpec((H, A), lambda i: (0, 0)),    # W3
                pl.BlockSpec((1, A), lambda i: (0, 0)),    # b3
            ],
            out_specs=pl.BlockSpec((tb, A), lambda i: (i, 0)),  # unpadded (tb, A)
        ),
        compiler_params=pltpu.CompilerParams(
            dimension_semantics=("parallel",),
            vmem_limit_bytes=32 * 1024 * 1024,  # raise v5e's 16 MiB scoped default
        ),
        cost_estimate=pl.CostEstimate(
            flops=flops, transcendentals=0, bytes_accessed=bytes_accessed),
    )(x, w1, b1, w2, b2, w3, b3)

    return out


def init_dqn_params(key, state_size, action_size, hidden_size=64, dtype=jnp.float32):
    """Deterministic init mimicking PyTorch nn.Linear default U[-1/sqrt(fan_in), +1/sqrt(fan_in)]."""
    def linear(k, fan_in, fan_out):
        kw, kb = jax.random.split(k)
        bound = 1.0 / jnp.sqrt(jnp.array(fan_in, dtype))
        w = jax.random.uniform(kw, (fan_in, fan_out), dtype, -bound, bound)
        b = jax.random.uniform(kb, (1, fan_out), dtype, -bound, bound)
        return w, b

    k1, k2, k3 = jax.random.split(key, 3)
    w1, b1 = linear(k1, state_size, hidden_size)
    w2, b2 = linear(k2, hidden_size, hidden_size)
    w3, b3 = linear(k3, hidden_size, action_size)
    return (w1, b1, w2, b2, w3, b3)


def dqn_reference_f32(x, params):
    """Pure-f32 reference (loose check)."""
    w1, b1, w2, b2, w3, b3 = params
    h1 = jnp.maximum(x @ w1 + b1, 0.0)
    h2 = jnp.maximum(h1 @ w2 + b2, 0.0)
    return h2 @ w3 + b3


def dqn_reference_matched(x, params, compute_dtype=jnp.bfloat16):
    """Reference that mirrors the kernel's bf16-matmul / f32-accumulate math."""
    w1, b1, w2, b2, w3, b3 = params
    xc = x.astype(compute_dtype)
    h1 = jnp.dot(xc, w1.astype(compute_dtype),
                 preferred_element_type=jnp.float32) + b1
    h1 = jnp.maximum(h1, 0.0)
    h2 = jnp.dot(h1.astype(compute_dtype), w2.astype(compute_dtype),
                 preferred_element_type=jnp.float32) + b2
    h2 = jnp.maximum(h2, 0.0)
    return jnp.dot(h2.astype(compute_dtype), w3.astype(compute_dtype),
                   preferred_element_type=jnp.float32) + b3


if __name__ == "__main__":
    key = jax.random.PRNGKey(0)
    kx, kp = jax.random.split(key)

    batch = 64
    state_size = 16
    action_size = 4
    hidden_size = 64

    x = jax.random.normal(kx, (batch, state_size), dtype=jnp.float32)
    params = init_dqn_params(kp, state_size, action_size, hidden_size)

    # Weight prep happens once, outside the hot path.
    prepared = prepare_params(params)

    out = dqn_forward(x, prepared)
    out = jax.block_until_ready(out)

    assert out.shape == (batch, action_size), out.shape

    ref_matched = dqn_reference_matched(x, params)
    ref_f32 = dqn_reference_f32(x, params)
    assert jnp.allclose(out, ref_matched, atol=1e-4, rtol=1e-4), \
        "mismatch vs bf16-matched JAX reference"
    assert jnp.allclose(out, ref_f32, atol=5e-2, rtol=5e-2), \
        "mismatch vs f32 JAX reference"

    print("KERNEL_OK")
</pallas_src>

<mosaic_0001>
module attributes {stable_mosaic.version = 11 : i64} {
  func.func @dqn_mlp_kernel(%arg0: i32, %arg1: memref<64x16xf32, #tpu.memory_space<vmem>>, %arg2: memref<16x64xbf16, #tpu.memory_space<vmem>>, %arg3: memref<1x64xf32, #tpu.memory_space<vmem>>, %arg4: memref<64x64xbf16, #tpu.memory_space<vmem>>, %arg5: memref<1x64xf32, #tpu.memory_space<vmem>>, %arg6: memref<64x4xbf16, #tpu.memory_space<vmem>>, %arg7: memref<1x4xf32, #tpu.memory_space<vmem>>, %arg8: memref<64x4xf32, #tpu.memory_space<vmem>>) attributes {dimension_semantics = [#tpu.dimension_semantics<parallel>], iteration_bounds = array<i64: 1>, scalar_prefetch = 0 : i64, scratch_operands = 0 : i64, tpu.core_type = #tpu.core_type<tc>, window_params = [{transform_indices = @transform_0, window_bounds = array<i64: 64, 16>}, {pipeline_mode = #tpu.pipeline_mode<synchronous>, transform_indices = @transform_1, window_bounds = array<i64: 16, 64>}, {pipeline_mode = #tpu.pipeline_mode<synchronous>, transform_indices = @transform_2, window_bounds = array<i64: 1, 64>}, {pipeline_mode = #tpu.pipeline_mode<synchronous>, transform_indices = @transform_3, window_bounds = array<i64: 64, 64>}, {pipeline_mode = #tpu.pipeline_mode<synchronous>, transform_indices = @transform_4, window_bounds = array<i64: 1, 64>}, {pipeline_mode = #tpu.pipeline_mode<synchronous>, transform_indices = @transform_5, window_bounds = array<i64: 64, 4>}, {pipeline_mode = #tpu.pipeline_mode<synchronous>, transform_indices = @transform_6, window_bounds = array<i64: 1, 4>}, {transform_indices = @transform_7, window_bounds = array<i64: 64, 4>}]} {
    %c0 = arith.constant 0 : index
    %c0_0 = arith.constant 0 : index
    %0 = vector.load %arg1[%c0, %c0_0] : memref<64x16xf32, #tpu.memory_space<vmem>>, vector<64x16xf32>
    %1 = arith.truncf %0 : vector<64x16xf32> to vector<64x16xbf16>
    %c0_1 = arith.constant 0 : index
    %c0_2 = arith.constant 0 : index
    %2 = vector.load %arg2[%c0_1, %c0_2] : memref<16x64xbf16, #tpu.memory_space<vmem>>, vector<16x64xbf16>
    %cst = arith.constant dense<0.000000e+00> : vector<64x64xf32>
    %3 = tpu.matmul %1, %2, %cst {dimension_numbers = #tpu.dot_dimension_numbers<[1], [0], [0], [1], [0, 0, 1, 1], [], []>} : vector<64x16xbf16>, vector<16x64xbf16>, vector<64x64xf32> -> vector<64x64xf32>
    %c0_3 = arith.constant 0 : index
    %c0_4 = arith.constant 0 : index
    %4 = vector.load %arg3[%c0_3, %c0_4] : memref<1x64xf32, #tpu.memory_space<vmem>>, vector<1x64xf32>
    %5 = vector.broadcast %4 : vector<1x64xf32> to vector<64x64xf32>
    %6 = arith.addf %3, %5 : vector<64x64xf32>
    %cst_5 = arith.constant 0.000000e+00 : f32
    %7 = vector.broadcast %cst_5 : f32 to vector<64x64xf32>
    %8 = arith.maximumf %6, %7 : vector<64x64xf32>
    %9 = arith.truncf %8 : vector<64x64xf32> to vector<64x64xbf16>
    %c0_6 = arith.constant 0 : index
    %c0_7 = arith.constant 0 : index
    %10 = vector.load %arg4[%c0_6, %c0_7] : memref<64x64xbf16, #tpu.memory_space<vmem>>, vector<64x64xbf16>
    %cst_8 = arith.constant dense<0.000000e+00> : vector<64x64xf32>
    %11 = tpu.matmul %9, %10, %cst_8 {dimension_numbers = #tpu.dot_dimension_numbers<[1], [0], [0], [1], [0, 0, 1, 1], [], []>} : vector<64x64xbf16>, vector<64x64xbf16>, vector<64x64xf32> -> vector<64x64xf32>
    %c0_9 = arith.constant 0 : index
    %c0_10 = arith.constant 0 : index
    %12 = vector.load %arg5[%c0_9, %c0_10] : memref<1x64xf32, #tpu.memory_space<vmem>>, vector<1x64xf32>
    %13 = vector.broadcast %12 : vector<1x64xf32> to vector<64x64xf32>
    %14 = arith.addf %11, %13 : vector<64x64xf32>
    %cst_11 = arith.constant 0.000000e+00 : f32
    %15 = vector.broadcast %cst_11 : f32 to vector<64x64xf32>
    %16 = arith.maximumf %14, %15 : vector<64x64xf32>
    %17 = arith.truncf %16 : vector<64x64xf32> to vector<64x64xbf16>
    %c0_12 = arith.constant 0 : index
    %c0_13 = arith.constant 0 : index
    %18 = vector.load %arg6[%c0_12, %c0_13] : memref<64x4xbf16, #tpu.memory_space<vmem>>, vector<64x4xbf16>
    %cst_14 = arith.constant dense<0.000000e+00> : vector<64x4xf32>
    %19 = tpu.matmul %17, %18, %cst_14 {dimension_numbers = #tpu.dot_dimension_numbers<[1], [0], [0], [1], [0, 0, 1, 1], [], []>} : vector<64x64xbf16>, vector<64x4xbf16>, vector<64x4xf32> -> vector<64x4xf32>
    %c0_15 = arith.constant 0 : index
    %c0_16 = arith.constant 0 : index
    %20 = vector.load %arg7[%c0_15, %c0_16] : memref<1x4xf32, #tpu.memory_space<vmem>>, vector<1x4xf32>
    %21 = vector.broadcast %20 : vector<1x4xf32> to vector<64x4xf32>
    %22 = arith.addf %19, %21 : vector<64x4xf32>
    %c0_17 = arith.constant 0 : index
    %c0_18 = arith.constant 0 : index
    %23 = vector.load %arg8[%c0_17, %c0_18] : memref<64x4xf32, #tpu.memory_space<vmem>>, vector<64x4xf32>
    tpu.vector_store %arg8[%c0_17, %c0_18], %22 {strides = array<i32>} : memref<64x4xf32, #tpu.memory_space<vmem>>, vector<64x4xf32>,
    return
  }
  func.func @transform_0(%arg0: i32) -> (i32, i32) {
    %c0_i32 = arith.constant 0 : i32
    %c0_i32_0 = arith.constant 0 : i32
    return %arg0, %c0_i32 : i32, i32
  }
  func.func @transform_1(%arg0: i32) -> (i32, i32) {
    %c0_i32 = arith.constant 0 : i32
    %c0_i32_0 = arith.constant 0 : i32
    %c0_i32_1 = arith.constant 0 : i32
    return %c0_i32, %c0_i32_0 : i32, i32
  }
  func.func @transform_2(%arg0: i32) -> (i32, i32) {
    %c0_i32 = arith.constant 0 : i32
    %c0_i32_0 = arith.constant 0 : i32
    %c0_i32_1 = arith.constant 0 : i32
    return %c0_i32, %c0_i32_0 : i32, i32
  }
  func.func @transform_3(%arg0: i32) -> (i32, i32) {
    %c0_i32 = arith.constant 0 : i32
    %c0_i32_0 = arith.constant 0 : i32
    %c0_i32_1 = arith.constant 0 : i32
    return %c0_i32, %c0_i32_0 : i32, i32
  }
  func.func @transform_4(%arg0: i32) -> (i32, i32) {
    %c0_i32 = arith.constant 0 : i32
    %c0_i32_0 = arith.constant 0 : i32
    %c0_i32_1 = arith.constant 0 : i32
    return %c0_i32, %c0_i32_0 : i32, i32
  }
  func.func @transform_5(%arg0: i32) -> (i32, i32) {
    %c0_i32 = arith.constant 0 : i32
    %c0_i32_0 = arith.constant 0 : i32
    %c0_i32_1 = arith.constant 0 : i32
    return %c0_i32, %c0_i32_0 : i32, i32
  }
  func.func @transform_6(%arg0: i32) -> (i32, i32) {
    %c0_i32 = arith.constant 0 : i32
    %c0_i32_0 = arith.constant 0 : i32
    %c0_i32_1 = arith.constant 0 : i32
    return %c0_i32, %c0_i32_0 : i32, i32
  }
  func.func @transform_7(%arg0: i32) -> (i32, i32) {
    %c0_i32 = arith.constant 0 : i32
    %c0_i32_0 = arith.constant 0 : i32
    return %arg0, %c0_i32 : i32, i32
  }
}

</mosaic_0001>

<llo_original>
// kernel: tpu_custom_call.1
$region0: #{tpu_custom_call.1}
  #allocation0 [shape = 'u32[]', space=smem, size = 0x4, offset = 0x4, fixed_abs, tag = 'smem constant byte address 0x4 - core index']
  #allocation1 [shape = 'u32[72,128]{1,0:T(1,128)}', space=vmem, size = 0x9000, scoped, tag = 'internal scratch']
  %s0 = inlined_call_operand.vmem [shape: f32[64,16], index: 0, kind: input, shape index: {}]
  %s1 = inlined_call_operand.vmem [shape: bf16[16,64], index: 1, kind: input, shape index: {}]
  %s2 = inlined_call_operand.vmem [shape: f32[1,64], index: 2, kind: input, shape index: {}]
  %s3 = inlined_call_operand.vmem [shape: bf16[64,64], index: 3, kind: input, shape index: {}]
  %s4 = inlined_call_operand.vmem [shape: f32[1,64], index: 4, kind: input, shape index: {}]
  %s5 = inlined_call_operand.vmem [shape: bf16[64,4], index: 5, kind: input, shape index: {}]
  %s6 = inlined_call_operand.vmem [shape: f32[1,4], index: 6, kind: input, shape index: {}]
  %s7 = inlined_call_operand.vmem [shape: f32[64,4], index: 7, kind: output, shape index: {}]
  %s8 = sld [smem:[#allocation0]]
  $region38: #{tpu_custom_call.1} parent=0
    _
  %s10 = ssub.s32 1, %s8
  %s11 = scalar_select 0, %s10, %s8
  // Predicated region
  $region2: #{tpu_custom_call.1} parent=0 // pred_check
    _
  $region3: #{tpu_custom_call.1} parent=0 // pred_check_branch
    %13 = sbr.rel (0) target = $region5
  $region4: #{tpu_custom_call.1} parent=0 // pred_region
    _
  $region5: #{tpu_custom_call.1} parent=0 // pred_fallthru
    _
  // Predicated region
  $region6: #{tpu_custom_call.1} parent=0 // pred_check
    _
  $region7: #{tpu_custom_call.1} parent=0 // pred_check_branch
    %15 = sbr.rel (0) target = $region9
  $region8: #{tpu_custom_call.1} parent=0 // pred_region
    _
  $region9: #{tpu_custom_call.1} parent=0 // pred_fallthru
    _
  // Predicated region
  $region10: #{tpu_custom_call.1} parent=0 // pred_check
    _
  $region11: #{tpu_custom_call.1} parent=0 // pred_check_branch
    %17 = sbr.rel (0) target = $region13
  $region12: #{tpu_custom_call.1} parent=0 // pred_region
    _
  $region13: #{tpu_custom_call.1} parent=0 // pred_fallthru
    _
  // Predicated region
  $region14: #{tpu_custom_call.1} parent=0 // pred_check
    _
  $region15: #{tpu_custom_call.1} parent=0 // pred_check_branch
    %19 = sbr.rel (0) target = $region17
  $region16: #{tpu_custom_call.1} parent=0 // pred_region
    _
  $region17: #{tpu_custom_call.1} parent=0 // pred_fallthru
    _
  // Predicated region
  $region18: #{tpu_custom_call.1} parent=0 // pred_check
    _
  $region19: #{tpu_custom_call.1} parent=0 // pred_check_branch
    %21 = sbr.rel (0) target = $region21
  $region20: #{tpu_custom_call.1} parent=0 // pred_region
    _
  $region21: #{tpu_custom_call.1} parent=0 // pred_fallthru
    _
  // Predicated region
  $region22: #{tpu_custom_call.1} parent=0 // pred_check
    _
  $region23: #{tpu_custom_call.1} parent=0 // pred_check_branch
    %23 = sbr.rel (0) target = $region25
  $region24: #{tpu_custom_call.1} parent=0 // pred_region
    _
  $region25: #{tpu_custom_call.1} parent=0 // pred_fallthru
    _
  // Predicated region
  $region26: #{tpu_custom_call.1} parent=0 // pred_check
    _
  $region27: #{tpu_custom_call.1} parent=0 // pred_check_branch
    %25 = sbr.rel (0) target = $region29
  $region28: #{tpu_custom_call.1} parent=0 // pred_region
    _
  $region29: #{tpu_custom_call.1} parent=0 // pred_fallthru
    _
  %v27 = vld [vmem:[%s0] sm:$0xff]
  %v28 = vld [vmem:[%s0 + $0x8] sm:$0xff]
  %v29 = vld [vmem:[%s0 + $0x10] sm:$0xff]
  %v30 = vld [vmem:[%s0 + $0x18] sm:$0xff]
  %v31 = vld [vmem:[%s0 + $0x20] sm:$0xff]
  %v32 = vld [vmem:[%s0 + $0x28] sm:$0xff]
  %v33 = vld [vmem:[%s0 + $0x30] sm:$0xff]
  %v34 = vld [vmem:[%s0 + $0x38] sm:$0xff]
  %v35 = vpack.c.bf16 %v28, %v27
  %v36 = vpack.c.bf16 %v30, %v29
  %v37 = vpack.c.bf16 %v32, %v31
  %v38 = vpack.c.bf16 %v34, %v33
  %v39 = vld [vmem:[%s1] sm:$0xf]
  %v40 = vld [vmem:[%s1 + $0x4] sm:$0xf]
  %v41 = vld [vmem:[%s2] sm:$0x1]
  %v43 = vperm.slane %v41, 0
  %v47 = vunpack.c.l.b16 %v39
  %v48 = vunpack.c.l.b16 %v40
  %v49 = vpack.c.b16 %v48, %v47
  %vm51 = vcmask 130048
  %v53 = vsel %vm51, %v35, 0
  %v56 = vsel %vm51, %v36, 0
  %v59 = vsel %vm51, %v37, 0
  %v62 = vsel %vm51, %v38, 0
  %64 = vmatpush.bf16.msra.mxu0 0
  %65 = vmatpush.bf16.msra.mxu0 0
  %66 = vmatpush.bf16.msra.mxu0 0
  %67 = vmatpush.bf16.msra.mxu0 0
  %68 = vmatpush.bf16.msra.mxu0 0
  %69 = vmatpush.bf16.msra.mxu0 0
  %70 = vmatpush.bf16.msra.mxu0 0
  %71 = vmatpush.bf16.msra.mxu0 %v49
  %72 = vmatmul.bf16.gmra.mxu0 %v53
  %v73 = vpop.f32.mrf.mxu0
  %v74 = vadd.f32 %v43, %v73
  %v75 = vpop.f32.mrf.mxu0
  %v76 = vadd.f32 %v43, %v75
  %77 = vmatmul.bf16.gmra.mxu0 %v56
  %v78 = vpop.f32.mrf.mxu0
  %v79 = vadd.f32 %v43, %v78
  %v80 = vpop.f32.mrf.mxu0
  %v81 = vadd.f32 %v43, %v80
  %82 = vmatmul.bf16.gmra.mxu0 %v59
  %v83 = vpop.f32.mrf.mxu0
  %v84 = vadd.f32 %v43, %v83
  %v85 = vpop.f32.mrf.mxu0
  %v86 = vadd.f32 %v43, %v85
  %87 = vmatmul.bf16.gmra.mxu0 %v62
  %v88 = vpop.f32.mrf.mxu0
  %v89 = vadd.f32 %v43, %v88
  %v90 = vpop.f32.mrf.mxu0
  %v91 = vadd.f32 %v43, %v90
  %92 = vdwg.mxu0
  %v93 = vmax.f32 %v74, 0.0
  %v94 = vmax.f32 %v76, 0.0
  %v95 = vmax.f32 %v79, 0.0
  %v96 = vmax.f32 %v81, 0.0
  %v97 = vmax.f32 %v84, 0.0
  %v98 = vmax.f32 %v86, 0.0
  %v99 = vmax.f32 %v89, 0.0
  %v100 = vmax.f32 %v91, 0.0
  %v101 = vpack.c.bf16 %v94, %v93
  %v102 = vpack.c.bf16 %v96, %v95
  %v103 = vpack.c.bf16 %v98, %v97
  %v104 = vpack.c.bf16 %v100, %v99
  %v105 = vld [vmem:[%s3] sm:$0xf]
  %v106 = vld [vmem:[%s3 + $0x4] sm:$0xf]
  %v107 = vld [vmem:[%s3 + $0x8] sm:$0xf]
  %v108 = vld [vmem:[%s3 + $0xc] sm:$0xf]
  %v109 = vld [vmem:[%s3 + $0x10] sm:$0xf]
  %v110 = vld [vmem:[%s3 + $0x14] sm:$0xf]
  %v111 = vld [vmem:[%s3 + $0x18] sm:$0xf]
  %v112 = vld [vmem:[%s3 + $0x1c] sm:$0xf]
  %v113 = vld [vmem:[%s4] sm:$0x1]
  %v115 = vperm.slane %v113, 0
  %v125 = vunpack.c.l.b16 %v105
  %v126 = vunpack.c.l.b16 %v106
  %v127 = vunpack.c.l.b16 %v107
  %v128 = vunpack.c.l.b16 %v108
  %v129 = vunpack.c.l.b16 %v109
  %v130 = vunpack.c.l.b16 %v110
  %v131 = vunpack.c.l.b16 %v111
  %v132 = vunpack.c.l.b16 %v112
  %v133 = vpack.c.b16 %v126, %v125
  %v134 = vpack.c.b16 %v128, %v127
  %v135 = vpack.c.b16 %v130, %v129
  %v136 = vpack.c.b16 %v132, %v131
  %vm141 = vcmask 523264
  %v143 = vsel %vm141, %v101, 0
  %v146 = vsel %vm141, %v102, 0
  %v149 = vsel %vm141, %v103, 0
  %v152 = vsel %vm141, %v104, 0
  %154 = vmatpush.bf16.msra.mxu0 0
  %155 = vmatpush.bf16.msra.mxu0 0
  %156 = vmatpush.bf16.msra.mxu0 0
  %157 = vmatpush.bf16.msra.mxu0 0
  %158 = vmatpush.bf16.msra.mxu0 %v136
  %159 = vmatpush.bf16.msra.mxu0 %v135
  %160 = vmatpush.bf16.msra.mxu0 %v134
  %161 = vmatpush.bf16.msra.mxu0 %v133
  %162 = vmatmul.bf16.gmra.mxu0 %v143
  %v163 = vpop.f32.mrf.mxu0
  %v164 = vadd.f32 %v115, %v163
  %v165 = vpop.f32.mrf.mxu0
  %v166 = vadd.f32 %v115, %v165
  %167 = vmatmul.bf16.gmra.mxu0 %v146
  %v168 = vpop.f32.mrf.mxu0
  %v169 = vadd.f32 %v115, %v168
  %v170 = vpop.f32.mrf.mxu0
  %v171 = vadd.f32 %v115, %v170
  %172 = vmatmul.bf16.gmra.mxu0 %v149
  %v173 = vpop.f32.mrf.mxu0
  %v174 = vadd.f32 %v115, %v173
  %v175 = vpop.f32.mrf.mxu0
  %v176 = vadd.f32 %v115, %v175
  %177 = vmatmul.bf16.gmra.mxu0 %v152
  %v178 = vpop.f32.mrf.mxu0
  %v179 = vadd.f32 %v115, %v178
  %v180 = vpop.f32.mrf.mxu0
  %v181 = vadd.f32 %v115, %v180
  %182 = vdwg.mxu0
  %v183 = vmax.f32 %v164, 0.0
  %v184 = vmax.f32 %v166, 0.0
  %v185 = vmax.f32 %v169, 0.0
  %v186 = vmax.f32 %v171, 0.0
  %v187 = vmax.f32 %v174, 0.0
  %v188 = vmax.f32 %v176, 0.0
  %v189 = vmax.f32 %v179, 0.0
  %v190 = vmax.f32 %v181, 0.0
  %v191 = vpack.c.bf16 %v184, %v183
  %v192 = vpack.c.bf16 %v186, %v185
  %v193 = vpack.c.bf16 %v188, %v187
  %v194 = vpack.c.bf16 %v190, %v189
  %v195 = vld [vmem:[%s5] sm:$0xf]
  %v196 = vld [vmem:[%s5 + $0x4] sm:$0xf]
  %v197 = vld [vmem:[%s5 + $0x8] sm:$0xf]
  %v198 = vld [vmem:[%s5 + $0xc] sm:$0xf]
  %v199 = vld [vmem:[%s5 + $0x10] sm:$0xf]
  %v200 = vld [vmem:[%s5 + $0x14] sm:$0xf]
  %v201 = vld [vmem:[%s5 + $0x18] sm:$0xf]
  %v202 = vld [vmem:[%s5 + $0x1c] sm:$0xf]
  %v203 = vld [vmem:[%s6] sm:$0x1]
  %v205 = vperm.slane %v203, 0
  %v215 = vunpack.c.l.b16 %v195
  %v216 = vunpack.c.l.b16 %v196
  %v217 = vunpack.c.l.b16 %v197
  %v218 = vunpack.c.l.b16 %v198
  %v219 = vunpack.c.l.b16 %v199
  %v220 = vunpack.c.l.b16 %v200
  %v221 = vunpack.c.l.b16 %v201
  %v222 = vunpack.c.l.b16 %v202
  %v223 = vpack.c.b16 %v216, %v215
  %v224 = vpack.c.b16 %v218, %v217
  %v225 = vpack.c.b16 %v220, %v219
  %v226 = vpack.c.b16 %v222, %v221
  %v232 = vsel %vm141, %v191, 0
  %v235 = vsel %vm141, %v192, 0
  %v238 = vsel %vm141, %v193, 0
  %v241 = vsel %vm141, %v194, 0
  %243 = vmatpush.bf16.msra.mxu0 0
  %244 = vmatpush.bf16.msra.mxu0 0
  %245 = vmatpush.bf16.msra.mxu0 0
  %246 = vmatpush.bf16.msra.mxu0 0
  %247 = vmatpush.bf16.msra.mxu0 %v226
  %248 = vmatpush.bf16.msra.mxu0 %v225
  %249 = vmatpush.bf16.msra.mxu0 %v224
  %250 = vmatpush.bf16.msra.mxu0 %v223
  %251 = vmatmul.bf16.gmra.mxu0 %v232
  %v252 = vpop.f32.mrf.mxu0
  %v253 = vadd.f32 %v205, %v252
  %v254 = vpop.f32.mrf.mxu0
  %v255 = vadd.f32 %v205, %v254
  %256 = vmatmul.bf16.gmra.mxu0 %v235
  %v257 = vpop.f32.mrf.mxu0
  %v258 = vadd.f32 %v205, %v257
  %v259 = vpop.f32.mrf.mxu0
  %v260 = vadd.f32 %v205, %v259
  %261 = vmatmul.bf16.gmra.mxu0 %v238
  %v262 = vpop.f32.mrf.mxu0
  %v263 = vadd.f32 %v205, %v262
  %v264 = vpop.f32.mrf.mxu0
  %v265 = vadd.f32 %v205, %v264
  %266 = vmatmul.bf16.gmra.mxu0 %v241
  %v267 = vpop.f32.mrf.mxu0
  %v268 = vadd.f32 %v205, %v267
  %v269 = vpop.f32.mrf.mxu0
  %v270 = vadd.f32 %v205, %v269
  %271 = vdwg.mxu0
  %vm272 = vcmask 31744
  %273 = vst.msk [vmem:[%s7] sm:$0xff] %vm272, %v253
  %274 = vst.msk [vmem:[%s7 + $0x8] sm:$0xff] %vm272, %v255
  %275 = vst.msk [vmem:[%s7 + $0x10] sm:$0xff] %vm272, %v258
  %276 = vst.msk [vmem:[%s7 + $0x18] sm:$0xff] %vm272, %v260
  %277 = vst.msk [vmem:[%s7 + $0x20] sm:$0xff] %vm272, %v263
  %278 = vst.msk [vmem:[%s7 + $0x28] sm:$0xff] %vm272, %v265
  %279 = vst.msk [vmem:[%s7 + $0x30] sm:$0xff] %vm272, %v268
  %280 = vst.msk [vmem:[%s7 + $0x38] sm:$0xff] %vm272, %v270
  // Predicated region
  $region30: #{tpu_custom_call.1} parent=0 // pred_check
    _
  $region31: #{tpu_custom_call.1} parent=0 // pred_check_branch
    %282 = sbr.rel (0) target = $region33
  $region32: #{tpu_custom_call.1} parent=0 // pred_region
    _
  $region33: #{tpu_custom_call.1} parent=0 // pred_fallthru
    _
  // Predicated region
  $region34: #{tpu_custom_call.1} parent=0 // pred_check
    _
  $region35: #{tpu_custom_call.1} parent=0 // pred_check_branch
    %284 = sbr.rel (0) target = $region37
  $region36: #{tpu_custom_call.1} parent=0 // pred_region
    _
  $region37: #{tpu_custom_call.1} parent=0 // pred_fallthru
    _

</llo_original>
